<compile_context>
chip_gen: v7x
topology: tpu7x:2x2x1
jax: 0.10.0
libtpu: 0.0.40
codegen_flags: <defaults>
</compile_context>

<pallas_src>
import numpy as np

import jax
import jax.numpy as jnp
from jax.experimental import pallas as pl
from jax.experimental.pallas import tpu as pltpu

INPUT_SIZE = 4
HIDDEN_SIZE = 10
OUTPUT_SIZE = 3
_LANE = 128


def fnn_kernel(x_ref, w1_ref, b1_ref, w2_ref, b2_ref, o_ref):
    # x_ref: (IN, TB)   -- batch on the lane axis, bf16 (or f32)
    # w1_ref: (HID, IN), b1_ref: (HID, 1) f32
    # w2_ref: (OUT, HID), b2_ref: (OUT, 1) f32
    # o_ref: (OUT, TB) f32
    x = x_ref[...]

    # fc1 + ReLU: (10, 4) @ (4, TB) -> (10, TB); MXU accumulates in f32.
    h = jnp.dot(w1_ref[...], x, preferred_element_type=jnp.float32) + b1_ref[...]
    h = jnp.maximum(h, 0.0)

    # fc2: (3, 10) @ (10, TB) -> (3, TB); cast h to the matmul dtype so the MXU
    # runs its native single-pass bf16 path (no-op when compute dtype is f32).
    logits = jnp.dot(w2_ref[...], h.astype(w2_ref.dtype),
                     preferred_element_type=jnp.float32) + b2_ref[...]

    # Softmax over the class axis (axis 0 in this transposed layout).
    # Exact normalization: the kernel is memory-bound, so the divide is free,
    # and rows sum to 1.0 to f32 rounding (fixes the approx-reciprocal bug).
    m = jnp.max(logits, axis=0, keepdims=True)
    e = jnp.exp(logits - m)
    denom = jnp.sum(e, axis=0, keepdims=True)
    o_ref[...] = (e / denom).astype(o_ref.dtype)


def fnn_forward_feature_major(x_t, w1, b1, w2, b2, *, tb=32768,
                              compute_dtype=jnp.bfloat16):
    """Feature-major fast path.

    x_t: (INPUT_SIZE, B_pad) with B_pad a multiple of 128. Returns (OUTPUT_SIZE,
    B_pad) probabilities. Use this directly when the surrounding pipeline keeps
    activations feature-major -- it removes the transpose/re-transpose HBM
    passes that otherwise dominate this memory-bound op.
    """
    in_dim, B_pad = x_t.shape
    assert in_dim == INPUT_SIZE and B_pad % _LANE == 0

    # Lane-aligned batch tile. Large tiles amortize the ~0.35us per-grid-step
    # cost; keep >= 2 tiles for large batches so the "parallel" axis feeds both
    # v7x TensorCores (no-op on single-TC v5e/v6e). tb<=64K stays well inside
    # v7x's 64 MiB VMEM; v5e/v6e can go higher via the tb argument.
    tb = max(_LANE, (min(int(tb), B_pad) // _LANE) * _LANE)
    if tb >= B_pad and B_pad >= 16 * _LANE:
        tb = pl.cdiv(B_pad // 2, _LANE) * _LANE
    n_tiles = pl.cdiv(B_pad, tb)  # ragged last tile OK: OOB lanes masked on write

    x_c = x_t.astype(compute_dtype)
    w1_t = w1.T.astype(compute_dtype)                      # (HID, IN)
    w2_t = w2.T.astype(compute_dtype)                      # (OUT, HID)
    b1_t = b1.reshape(HIDDEN_SIZE, 1).astype(jnp.float32)  # (HID, 1)
    b2_t = b2.reshape(OUTPUT_SIZE, 1).astype(jnp.float32)  # (OUT, 1)

    itemsize = np.dtype(compute_dtype).itemsize
    cost = pl.CostEstimate(
        flops=B_pad * (2 * INPUT_SIZE * HIDDEN_SIZE
                       + 2 * HIDDEN_SIZE * OUTPUT_SIZE
                       + HIDDEN_SIZE + 5 * OUTPUT_SIZE),
        transcendentals=B_pad * OUTPUT_SIZE,
        bytes_accessed=B_pad * (INPUT_SIZE * itemsize + OUTPUT_SIZE * 4)
                       + (w1.size + w2.size) * itemsize + (b1.size + b2.size) * 4,
    )

    return pl.pallas_call(
        fnn_kernel,
        out_shape=jax.ShapeDtypeStruct((OUTPUT_SIZE, B_pad), jnp.float32),
        grid=(n_tiles,),
        in_specs=[
            pl.BlockSpec((INPUT_SIZE, tb), lambda i: (0, i)),   # x tiles stream
            pl.BlockSpec(w1_t.shape, lambda i: (0, 0)),         # weights stay resident
            pl.BlockSpec(b1_t.shape, lambda i: (0, 0)),
            pl.BlockSpec(w2_t.shape, lambda i: (0, 0)),
            pl.BlockSpec(b2_t.shape, lambda i: (0, 0)),
        ],
        out_specs=pl.BlockSpec((OUTPUT_SIZE, tb), lambda i: (0, i)),  # lane-dense stores
        compiler_params=pltpu.CompilerParams(
            dimension_semantics=("parallel",),          # 2 TCs on v7x
            vmem_limit_bytes=48 * 1024 * 1024,          # headroom under v7x 64 MiB
        ),
        cost_estimate=cost,
    )(x_c, w1_t, b1_t, w2_t, b2_t)


def fnn_forward(x, w1, b1, w2, b2, *, tb=32768, compute_dtype=jnp.bfloat16):
    """PyTorch-style API. x: (B, INPUT_SIZE) -> (B, OUTPUT_SIZE) probabilities."""
    B = x.shape[0]
    # Pad only to a multiple of 128 lanes (<1% waste), not to a multiple of tb.
    B_pad = pl.cdiv(B, _LANE) * _LANE
    # Cast before the transpose so the (small) layout-plumbing pass moves bf16,
    # not f32. TODO(synk): ideally the caller keeps activations feature-major
    # and uses fnn_forward_feature_major to skip this pass entirely.
    x_t = jnp.pad(x.astype(compute_dtype).T, ((0, 0), (0, B_pad - B)))
    out_t = fnn_forward_feature_major(x_t, w1, b1, w2, b2, tb=tb,
                                      compute_dtype=compute_dtype)
    return out_t[:, :B].T


def init_params(key):
    # PyTorch nn.Linear init: U(-1/sqrt(fan_in), 1/sqrt(fan_in)).
    # Weights stored (in_features, out_features); wrapper transposes for the kernel.
    k1, k2, k3, k4 = jax.random.split(key, 4)
    bound1 = 1.0 / jnp.sqrt(INPUT_SIZE)
    bound2 = 1.0 / jnp.sqrt(HIDDEN_SIZE)
    w1 = jax.random.uniform(k1, (INPUT_SIZE, HIDDEN_SIZE), jnp.float32, -bound1, bound1)
    b1 = jax.random.uniform(k2, (HIDDEN_SIZE,), jnp.float32, -bound1, bound1)
    w2 = jax.random.uniform(k3, (HIDDEN_SIZE, OUTPUT_SIZE), jnp.float32, -bound2, bound2)
    b2 = jax.random.uniform(k4, (OUTPUT_SIZE,), jnp.float32, -bound2, bound2)
    return w1, b1, w2, b2


if __name__ == "__main__":
    key = jax.random.PRNGKey(0)
    kx, kx2, kp = jax.random.split(key, 3)

    batch = 8  # small sanity-check size; real benchmarking needs thousands of rows
    x = jax.random.normal(kx, (batch, INPUT_SIZE), dtype=jnp.float32)
    w1, b1, w2, b2 = init_params(kp)

    # Plain-JAX f32 reference.
    ref_h = jnp.maximum(x @ w1 + b1[None, :], 0.0)
    ref = jax.nn.softmax(ref_h @ w2 + b2[None, :], axis=1)

    # Default path: bf16 matmul operands, f32 accumulate / softmax.
    out = jax.block_until_ready(fnn_forward(x, w1, b1, w2, b2))
    assert out.shape == (batch, OUTPUT_SIZE)
    # Exact normalization -> rows sum to 1 to f32 rounding.
    assert bool(jnp.allclose(jnp.sum(out, axis=1), 1.0, atol=1e-5))
    # bf16 operand tolerance vs the f32 reference.
    assert bool(jnp.allclose(out, ref, atol=5e-2))

    # f32 matmul path: tight match against the reference.
    out_f32 = jax.block_until_ready(
        fnn_forward(x, w1, b1, w2, b2, compute_dtype=jnp.float32))
    assert bool(jnp.allclose(out_f32, ref, atol=1e-4))

    # Multi-tile + ragged-last-tile path (B=300 pads to 384 lanes, tb=256 -> 2 tiles).
    batch2 = 300
    x2 = jax.random.normal(kx2, (batch2, INPUT_SIZE), dtype=jnp.float32)
    ref2 = jax.nn.softmax(jnp.maximum(x2 @ w1 + b1[None, :], 0.0) @ w2 + b2[None, :],
                          axis=1)
    out2 = jax.block_until_ready(
        fnn_forward(x2, w1, b1, w2, b2, tb=256, compute_dtype=jnp.float32))
    assert out2.shape == (batch2, OUTPUT_SIZE)
    assert bool(jnp.allclose(jnp.sum(out2, axis=1), 1.0, atol=1e-5))
    assert bool(jnp.allclose(out2, ref2, atol=1e-4))

    print("KERNEL_OK")
</pallas_src>

<mosaic_0001>
module attributes {stable_mosaic.version = 11 : i64} {
  func.func @fnn_kernel(%arg0: i32, %arg1: memref<4x128xbf16, #tpu.memory_space<vmem>>, %arg2: memref<10x4xbf16, #tpu.memory_space<vmem>>, %arg3: memref<10x1xf32, #tpu.memory_space<vmem>>, %arg4: memref<3x10xbf16, #tpu.memory_space<vmem>>, %arg5: memref<3x1xf32, #tpu.memory_space<vmem>>, %arg6: memref<3x128xf32, #tpu.memory_space<vmem>>) attributes {dimension_semantics = [#tpu.dimension_semantics<parallel>], iteration_bounds = array<i64: 1>, scalar_prefetch = 0 : i64, scratch_operands = 0 : i64, tpu.core_type = #tpu.core_type<tc>, window_params = [{transform_indices = @transform_0, window_bounds = array<i64: 4, 128>}, {pipeline_mode = #tpu.pipeline_mode<synchronous>, transform_indices = @transform_1, window_bounds = array<i64: 10, 4>}, {pipeline_mode = #tpu.pipeline_mode<synchronous>, transform_indices = @transform_2, window_bounds = array<i64: 10, 1>}, {pipeline_mode = #tpu.pipeline_mode<synchronous>, transform_indices = @transform_3, window_bounds = array<i64: 3, 10>}, {pipeline_mode = #tpu.pipeline_mode<synchronous>, transform_indices = @transform_4, window_bounds = array<i64: 3, 1>}, {transform_indices = @transform_5, window_bounds = array<i64: 3, 128>}]} {
    %c0 = arith.constant 0 : index
    %c0_0 = arith.constant 0 : index
    %0 = vector.load %arg1[%c0, %c0_0] : memref<4x128xbf16, #tpu.memory_space<vmem>>, vector<4x128xbf16>
    %c0_1 = arith.constant 0 : index
    %c0_2 = arith.constant 0 : index
    %1 = vector.load %arg2[%c0_1, %c0_2] : memref<10x4xbf16, #tpu.memory_space<vmem>>, vector<10x4xbf16>
    %cst = arith.constant dense<0.000000e+00> : vector<10x128xf32>
    %2 = tpu.matmul %1, %0, %cst {dimension_numbers = #tpu.dot_dimension_numbers<[1], [0], [0], [1], [0, 0, 1, 1], [], []>} : vector<10x4xbf16>, vector<4x128xbf16>, vector<10x128xf32> -> vector<10x128xf32>
    %c0_3 = arith.constant 0 : index
    %c0_4 = arith.constant 0 : index
    %3 = vector.load %arg3[%c0_3, %c0_4] : memref<10x1xf32, #tpu.memory_space<vmem>>, vector<10x1xf32>
    %4 = vector.broadcast %3 : vector<10x1xf32> to vector<10x128xf32>
    %5 = arith.addf %2, %4 : vector<10x128xf32>
    %cst_5 = arith.constant 0.000000e+00 : f32
    %6 = vector.broadcast %cst_5 : f32 to vector<10x128xf32>
    %7 = arith.maximumf %5, %6 : vector<10x128xf32>
    %c0_6 = arith.constant 0 : index
    %c0_7 = arith.constant 0 : index
    %8 = vector.load %arg4[%c0_6, %c0_7] : memref<3x10xbf16, #tpu.memory_space<vmem>>, vector<3x10xbf16>
    %9 = arith.truncf %7 : vector<10x128xf32> to vector<10x128xbf16>
    %cst_8 = arith.constant dense<0.000000e+00> : vector<3x128xf32>
    %10 = tpu.matmul %8, %9, %cst_8 {dimension_numbers = #tpu.dot_dimension_numbers<[1], [0], [0], [1], [0, 0, 1, 1], [], []>} : vector<3x10xbf16>, vector<10x128xbf16>, vector<3x128xf32> -> vector<3x128xf32>
    %c0_9 = arith.constant 0 : index
    %c0_10 = arith.constant 0 : index
    %11 = vector.load %arg5[%c0_9, %c0_10] : memref<3x1xf32, #tpu.memory_space<vmem>>, vector<3x1xf32>
    %12 = vector.broadcast %11 : vector<3x1xf32> to vector<3x128xf32>
    %13 = arith.addf %10, %12 : vector<3x128xf32>
    %cst_11 = arith.constant dense<0xFF800000> : vector<128xf32>
    %14 = vector.multi_reduction <maximumf>, %13, %cst_11 [0] : vector<3x128xf32> to vector<128xf32>
    %15 = vector.shape_cast %14 : vector<128xf32> to vector<1x128xf32>
    %16 = vector.broadcast %15 : vector<1x128xf32> to vector<3x128xf32>
    %17 = arith.subf %13, %16 : vector<3x128xf32>
    %18 = math.exp %17 : vector<3x128xf32>
    %cst_12 = arith.constant dense<0.000000e+00> : vector<128xf32>
    %19 = vector.multi_reduction <add>, %18, %cst_12 [0] : vector<3x128xf32> to vector<128xf32>
    %20 = vector.shape_cast %19 : vector<128xf32> to vector<1x128xf32>
    %21 = vector.broadcast %20 : vector<1x128xf32> to vector<3x128xf32>
    %22 = arith.divf %18, %21 : vector<3x128xf32>
    %c0_13 = arith.constant 0 : index
    %c0_14 = arith.constant 0 : index
    %23 = vector.load %arg6[%c0_13, %c0_14] : memref<3x128xf32, #tpu.memory_space<vmem>>, vector<3x128xf32>
    tpu.vector_store %arg6[%c0_13, %c0_14], %22 {strides = array<i32>} : memref<3x128xf32, #tpu.memory_space<vmem>>, vector<3x128xf32>,
    return
  }
  func.func @transform_0(%arg0: i32) -> (i32, i32) {
    %c0_i32 = arith.constant 0 : i32
    %c0_i32_0 = arith.constant 0 : i32
    return %c0_i32, %arg0 : i32, i32
  }
  func.func @transform_1(%arg0: i32) -> (i32, i32) {
    %c0_i32 = arith.constant 0 : i32
    %c0_i32_0 = arith.constant 0 : i32
    %c0_i32_1 = arith.constant 0 : i32
    return %c0_i32, %c0_i32_0 : i32, i32
  }
  func.func @transform_2(%arg0: i32) -> (i32, i32) {
    %c0_i32 = arith.constant 0 : i32
    %c0_i32_0 = arith.constant 0 : i32
    %c0_i32_1 = arith.constant 0 : i32
    return %c0_i32, %c0_i32_0 : i32, i32
  }
  func.func @transform_3(%arg0: i32) -> (i32, i32) {
    %c0_i32 = arith.constant 0 : i32
    %c0_i32_0 = arith.constant 0 : i32
    %c0_i32_1 = arith.constant 0 : i32
    return %c0_i32, %c0_i32_0 : i32, i32
  }
  func.func @transform_4(%arg0: i32) -> (i32, i32) {
    %c0_i32 = arith.constant 0 : i32
    %c0_i32_0 = arith.constant 0 : i32
    %c0_i32_1 = arith.constant 0 : i32
    return %c0_i32, %c0_i32_0 : i32, i32
  }
  func.func @transform_5(%arg0: i32) -> (i32, i32) {
    %c0_i32 = arith.constant 0 : i32
    %c0_i32_0 = arith.constant 0 : i32
    return %c0_i32, %arg0 : i32, i32
  }
}

</mosaic_0001>

<llo_original>
// kernel: tpu_custom_call.1
$region0: #{tpu_custom_call.1}
  #allocation0 [shape = 'u32[]', space=smem, size = 0x4, offset = 0x4, fixed_abs, tag = 'smem constant byte address 0x4 - core index']
  #allocation1 [shape = 'u32[144,128]{1,0:T(1,128)}', space=vmem, size = 0x12000, scoped, tag = 'internal scratch']
  %s0 = inlined_call_operand.vmem [shape: bf16[4,128], index: 0, kind: input, shape index: {}]
  %s1 = inlined_call_operand.vmem [shape: bf16[10,4], index: 1, kind: input, shape index: {}]
  %s2 = inlined_call_operand.vmem [shape: f32[10,1], index: 2, kind: input, shape index: {}]
  %s3 = inlined_call_operand.vmem [shape: bf16[3,10], index: 3, kind: input, shape index: {}]
  %s4 = inlined_call_operand.vmem [shape: f32[3,1], index: 4, kind: input, shape index: {}]
  %s5 = inlined_call_operand.hbm [shape: f32[3,128], index: 5, kind: output, shape index: {}]
  %s6 = sld [smem:[#allocation0]]
  $region30: #{tpu_custom_call.1} parent=0
    _
  %s8 = ssub.s32 1, %s6
  %s9 = scalar_select 0, %s8, %s6
  $region1: #{tpu_custom_call.1} parent=0
    #allocation2 [shape = 'u8[2048]{0}', space=vmem, size = 0x800, scoped, tag = 'output window, operand 0, single buffered']
    #allocation3 [shape = 's32[1]{0}', space=sflag, size = 0x4, scoped, tag = 'scoped memory for tpu_custom_call.1']
    %10 = vsyncpa [#allocation3], 0
    // Predicated region
    $region2: #{tpu_custom_call.1} parent=1 // pred_check
      _
    $region3: #{tpu_custom_call.1} parent=1 // pred_check_branch
      %12 = sbr.rel (0) target = $region5
    $region4: #{tpu_custom_call.1} parent=1 // pred_region
      _
    $region5: #{tpu_custom_call.1} parent=1 // pred_fallthru
      _
    // Predicated region
    $region6: #{tpu_custom_call.1} parent=1 // pred_check
      _
    $region7: #{tpu_custom_call.1} parent=1 // pred_check_branch
      %14 = sbr.rel (0) target = $region9
    $region8: #{tpu_custom_call.1} parent=1 // pred_region
      _
    $region9: #{tpu_custom_call.1} parent=1 // pred_fallthru
      _
    // Predicated region
    $region10: #{tpu_custom_call.1} parent=1 // pred_check
      _
    $region11: #{tpu_custom_call.1} parent=1 // pred_check_branch
      %16 = sbr.rel (0) target = $region13
    $region12: #{tpu_custom_call.1} parent=1 // pred_region
      _
    $region13: #{tpu_custom_call.1} parent=1 // pred_fallthru
      _
    // Predicated region
    $region14: #{tpu_custom_call.1} parent=1 // pred_check
      _
    $region15: #{tpu_custom_call.1} parent=1 // pred_check_branch
      %18 = sbr.rel (0) target = $region17
    $region16: #{tpu_custom_call.1} parent=1 // pred_region
      _
    $region17: #{tpu_custom_call.1} parent=1 // pred_fallthru
      _
    // Predicated region
    $region18: #{tpu_custom_call.1} parent=1 // pred_check
      _
    $region19: #{tpu_custom_call.1} parent=1 // pred_check_branch
      %20 = sbr.rel (0) target = $region21
    $region20: #{tpu_custom_call.1} parent=1 // pred_region
      _
    $region21: #{tpu_custom_call.1} parent=1 // pred_fallthru
      _
    %v22 = vld [vmem:[%s0] sm:$0x3]
    %v23 = vld [vmem:[%s1] sm:$0xf]
    %v24 = vld [vmem:[%s1 + $0x4] sm:$0x1]
    %v25 = vld [vmem:[%s2] sm:$0xff]
    %v26 = vld [vmem:[%s2 + $0x8] sm:$0x3]
    %28 = vset.pattern.permute.xlu0 0
    %29 = vperm.xlu0 %28, %v25
    %v30 = vpop.permute.xlu0 %29
    %33 = vset.pattern.permute.xlu0 0
    %34 = vperm.xlu0 %33, %v26
    %v35 = vpop.permute.xlu0 %34
    %v39 = vunpack.c.l.b16 %v23
    %v40 = vunpack.c.l.b16 %v24
    %v41 = vpack.c.b16 %v40, %v39
    %vm42 = vcmask 31744
    %v44 = vsel %vm42, %v41, 0
    %vm46 = vcmask 1041408
    %v48 = vsel %vm46, %v22, 0
    %50 = vmatprep.subr.bf16.mxu0 0
    %51 = vmatpush1.bf16.msra.mxu0 %v48
    %52 = vmatprep.subr.bf16.mxu0 0
    %53 = vmatpush1.bf16.msra.mxu0 0
    %54 = vmatprep.subr.bf16.mxu0 0
    %55 = vmatpush1.bf16.msra.mxu0 0
    %56 = vmatprep.subr.bf16.mxu0 0
    %57 = vmatpush1.bf16.msra.mxu0 0
    %58 = vmatprep.subr.bf16.mxu0 0
    %59 = vmatpush1.bf16.msra.mxu0 0
    %60 = vmatprep.subr.bf16.mxu0 0
    %61 = vmatpush1.bf16.msra.mxu0 0
    %62 = vmatprep.subr.bf16.mxu0 0
    %63 = vmatpush1.bf16.msra.mxu0 0
    %64 = vmatprep.subr.bf16.mxu0 0
    %65 = vmatpush1.bf16.msra.mxu0 0
    %66 = vmatprep.subr.bf16.mxu0 0
    %67 = vmatpush1.bf16.msra.mxu0 0
    %68 = vmatprep.subr.bf16.mxu0 0
    %69 = vmatpush1.bf16.msra.mxu0 0
    %70 = vmatprep.subr.bf16.mxu0 0
    %71 = vmatpush1.bf16.msra.mxu0 0
    %72 = vmatprep.subr.bf16.mxu0 0
    %73 = vmatpush1.bf16.msra.mxu0 0
    %74 = vmatprep.subr.bf16.mxu0 0
    %75 = vmatpush1.bf16.msra.mxu0 0
    %76 = vmatprep.subr.bf16.mxu0 0
    %77 = vmatpush1.bf16.msra.mxu0 0
    %78 = vmatprep.subr.bf16.mxu0 0
    %79 = vmatpush1.bf16.msra.mxu0 0
    %80 = vmatprep.subr.bf16.mxu0 0
    %81 = vmatpush1.bf16.msra.mxu0 0
    %82 = vmatprep.mubr.bf16.mxu0 0
    %83 = vmatmul.mubr.bf16.gmra.mrb[0].mxu0 %v44
    %v84 = vpop.f32.mrb[0].mxu0
    %v85 = vadd.f32 %v30, %v84
    %v86 = vpop.f32.mrb[0].mxu0
    %v87 = vpop.f32.mrb[0].mxu0
    %v88 = vadd.f32 %v35, %v87
    %v89 = vpop.f32.mrb[0].mxu0
    %90 = vdwg.mxu0
    %v91 = vmax.f32 %v85, 0.0
    %v92 = vmax.f32 %v88, 0.0
    %v93 = vld [vmem:[%s3] sm:$0x3]
    %v94 = vpack.c.bf16 %v92, %v91
    %v95 = vld [vmem:[%s4] sm:$0x7]
    %97 = vset.pattern.permute.xlu0 0
    %98 = vperm.xlu0 %97, %v95
    %v99 = vpop.permute.xlu0 %98
    %vm101 = vcmask 80896
    %v103 = vsel %vm101, %v93, 0
    %vm105 = vcmask 1044480
    %v107 = vsel %vm105, %v94, 0
    %109 = vmatprep.subr.bf16.mxu0 0
    %110 = vmatpush1.bf16.msra.mxu0 %v107
    %111 = vmatprep.subr.bf16.mxu0 0
    %112 = vmatpush1.bf16.msra.mxu0 0
    %113 = vmatprep.subr.bf16.mxu0 0
    %114 = vmatpush1.bf16.msra.mxu0 0
    %115 = vmatprep.subr.bf16.mxu0 0
    %116 = vmatpush1.bf16.msra.mxu0 0
    %117 = vmatprep.subr.bf16.mxu0 0
    %118 = vmatpush1.bf16.msra.mxu0 0
    %119 = vmatprep.subr.bf16.mxu0 0
    %120 = vmatpush1.bf16.msra.mxu0 0
    %121 = vmatprep.subr.bf16.mxu0 0
    %122 = vmatpush1.bf16.msra.mxu0 0
    %123 = vmatprep.subr.bf16.mxu0 0
    %124 = vmatpush1.bf16.msra.mxu0 0
    %125 = vmatprep.subr.bf16.mxu0 0
    %126 = vmatpush1.bf16.msra.mxu0 0
    %127 = vmatprep.subr.bf16.mxu0 0
    %128 = vmatpush1.bf16.msra.mxu0 0
    %129 = vmatprep.subr.bf16.mxu0 0
    %130 = vmatpush1.bf16.msra.mxu0 0
    %131 = vmatprep.subr.bf16.mxu0 0
    %132 = vmatpush1.bf16.msra.mxu0 0
    %133 = vmatprep.subr.bf16.mxu0 0
    %134 = vmatpush1.bf16.msra.mxu0 0
    %135 = vmatprep.subr.bf16.mxu0 0
    %136 = vmatpush1.bf16.msra.mxu0 0
    %137 = vmatprep.subr.bf16.mxu0 0
    %138 = vmatpush1.bf16.msra.mxu0 0
    %139 = vmatprep.subr.bf16.mxu0 0
    %140 = vmatpush1.bf16.msra.mxu0 0
    %141 = vmatprep.mubr.bf16.mxu0 0
    %142 = vmatmul.mubr.bf16.gmra.mrb[0].mxu0 %v103
    %v143 = vpop.f32.mrb[0].mxu0
    %v144 = vadd.f32 %v99, %v143
    %v145 = vpop.f32.mrb[0].mxu0
    %v146 = vpop.f32.mrb[0].mxu0
    %v147 = vpop.f32.mrb[0].mxu0
    %148 = vdwg.mxu0
    %vm149 = vcmask 1042432
    %v150 = vsel %vm149, %v144, -inf
    %v151 = vrot.slane %v150, 4
    %v152 = vmax.f32 %v150, %v151
    %v153 = vrot.slane %v152, 2
    %v154 = vmax.f32 %v152, %v153
    %v155 = vrot.slane %v154, 1
    %v156 = vmax.f32 %v154, %v155
    %v157 = vsub.f32 %v144, %v156
    %v158 = vmul.f32 %v157, 1.442695
    %v159 = vpow.pop %v158
    %v160 = vsel %vm149, %v159, 0.0
    %v161 = vrot.slane %v160, 4
    %v162 = vadd.f32 %v160, %v161
    %v163 = vrot.slane %v162, 2
    %v164 = vadd.f32 %v162, %v163
    %v165 = vrot.slane %v164, 1
    %v166 = vadd.f32 %v164, %v165
    %v167 = vrcp.pop %v166
    %v168 = vmul.f32 %v159, %v167
    %169 = vst [vmem:[#allocation2] sm:$0x7] %v168
    // Predicated region
    $region22: #{tpu_custom_call.1} parent=1 // pred_check
      _
    $region23: #{tpu_custom_call.1} parent=1 // pred_check_branch
      %171 = sbr.rel (0) target = $region25
    $region24: #{tpu_custom_call.1} parent=1 // pred_region
      %s173 = ssub.s32 64, 64
      %174 = vsyncadd [#allocation3], %s173
      %s176 = sshll.u32 [#allocation2], 4
      %s177 = int_to_ptr.vmem [resolvable:$true] %s176
      %179 = dma.vmem_to_hbm [thread:$0]  %s177, 64, %s5, [#allocation3]
    $region25: #{tpu_custom_call.1} parent=1 // pred_fallthru
      _
    // Predicated region
    $region26: #{tpu_custom_call.1} parent=1 // pred_check
      _
    $region27: #{tpu_custom_call.1} parent=1 // pred_check_branch
      %181 = sbr.rel (0) target = $region29
    $region28: #{tpu_custom_call.1} parent=1 // pred_region
      %182 = dma.done [#allocation3], 64
    $region29: #{tpu_custom_call.1} parent=1 // pred_fallthru
      _
    %183 = vsyncpa [#allocation3], 1

</llo_original>
